<compile_context>
chip_gen: v6e
topology: v6e:2x2x1
jax: 0.10.0
libtpu: 0.0.40
codegen_flags: <defaults>
</compile_context>

<pallas_src>
import functools

import jax
import jax.numpy as jnp
from jax.experimental import pallas as pl
from jax.experimental.pallas import tpu as pltpu


def _pick_tile(n, candidates):
    for c in candidates:
        if n % c == 0:
            return c
    return n


# ---------------------------------------------------------------------------
# Phase 1: hoisted input projection (one large matmul, no recurrence).
# ---------------------------------------------------------------------------
def _projection_kernel(x_ref, wT_ref, b_ref, o_ref):
    o_ref[...] = (
        jnp.dot(x_ref[...].astype(jnp.float32), wT_ref[...],
                preferred_element_type=jnp.float32)
        + b_ref[...]
    ).astype(o_ref.dtype)


def _input_projection(x2d, wT, b_row):
    R, D = x2d.shape
    row_tile = _pick_tile(R, (512, 256, 128, 64, 32, 16, 8))
    return pl.pallas_call(
        _projection_kernel,
        out_shape=jax.ShapeDtypeStruct((R, D), jnp.float32),
        grid_spec=pltpu.PrefetchScalarGridSpec(
            num_scalar_prefetch=0,
            grid=(R // row_tile,),
            in_specs=[
                pl.BlockSpec((row_tile, D), lambda i: (i, 0)),
                pl.BlockSpec((D, D), lambda i: (0, 0)),
                pl.BlockSpec((1, D), lambda i: (0, 0)),
            ],
            out_specs=pl.BlockSpec((row_tile, D), lambda i: (i, 0)),
        ),
        compiler_params=pltpu.CompilerParams(
            dimension_semantics=("parallel",),
        ),
    )(x2d, wT, b_row)


# ---------------------------------------------------------------------------
# Phase 2: the recurrence over time.
#   beta_t      = softmax( tanh(sig_t + beta_{t-1} @ Wb^T) @ We^T + be, axis=-1)
#   new_signal  = beta_t * x_t
# ---------------------------------------------------------------------------
def _recurrent_kernel(sig_ref, x_ref, wbT_ref, weT_ref, be_ref,
                      ns_ref, beta_ref, beta_scratch, *, num_steps):
    # Reset the carried beta at the start of each batch-block's time sequence.
    @pl.when(pl.program_id(1) == 0)
    def _():
        beta_scratch[...] = jnp.zeros_like(beta_scratch)

    # Hoist loop-invariant loads / broadcasts out of the unrolled recurrence.
    wbT = wbT_ref[...]
    weT = weT_ref[...]
    bt, d = beta_scratch.shape
    be_b = jnp.broadcast_to(be_ref[...], (bt, d))

    for tt in range(num_steps):  # fully unrolled; num_steps is a static constant
        beta = beta_scratch[...]                                   # (B, D)
        merged = jnp.tanh(
            sig_ref[tt]                                            # precomputed x@Wx^T + bx + bb
            + jnp.dot(beta, wbT, preferred_element_type=jnp.float32))
        energy = jnp.dot(merged, weT, preferred_element_type=jnp.float32) + be_b
        # softmax over the feature dim (PyTorch dim=1 of the (B, D) slice)
        m = jnp.max(energy, axis=-1, keepdims=True)
        e = jnp.exp(energy - m)
        s = jnp.sum(e, axis=-1, keepdims=True)
        new_beta = e * pl.reciprocal(s, approx=True)               # EUP slot

        beta_scratch[...] = new_beta
        ns_ref[tt] = (new_beta * x_ref[tt].astype(jnp.float32)).astype(ns_ref.dtype)
        beta_ref[:, tt, :] = new_beta.astype(beta_ref.dtype)       # (B, T, D) layout


def sensor_attention(sensor_data, params):
    """sensor_data: (T, B, D).  Returns (new_signals (T,B,D), sens_weights (B,T,D))."""
    T, B, D = sensor_data.shape
    wx, bx, wb, bb, we, be = params

    # Pre-transpose weights so the kernels compute x @ W^T directly.
    wxT = jnp.asarray(wx.T, jnp.float32)
    wbT = jnp.asarray(wb.T, jnp.float32)
    weT = jnp.asarray(we.T, jnp.float32)
    # bx and bb both feed the same tanh -> pre-sum into one fused bias.
    bias_xb = (bx + bb).reshape(1, D).astype(jnp.float32)
    be2 = be.reshape(1, D).astype(jnp.float32)

    # Phase 1: one (T*B, D) @ (D, D) matmul for the non-recurrent projection.
    sig = _input_projection(sensor_data.reshape(T * B, D), wxT, bias_xb)
    sig = sig.reshape(T, B, D)

    # Phase 2: recurrence, TT timesteps per grid step (amortizes grid overhead).
    TT = _pick_tile(T, (32, 16, 8, 4, 2))
    B_tile = B  # for large B on v7x, pick B_tile = B // 2 so the "parallel"
                # batch axis spreads across both TensorCores.

    step_in_spec = pl.BlockSpec((TT, B_tile, D), lambda b, t: (t, b, 0))
    weight_spec = pl.BlockSpec((D, D), lambda b, t: (0, 0))
    bias_spec = pl.BlockSpec((1, D), lambda b, t: (0, 0))
    ns_spec = pl.BlockSpec((TT, B_tile, D), lambda b, t: (t, b, 0))
    beta_spec = pl.BlockSpec((B_tile, TT, D), lambda b, t: (b, t, 0))

    kernel = functools.partial(_recurrent_kernel, num_steps=TT)

    new_signals, sens_weights = pl.pallas_call(
        kernel,
        out_shape=(
            jax.ShapeDtypeStruct((T, B, D), sensor_data.dtype),
            jax.ShapeDtypeStruct((B, T, D), jnp.float32),   # written directly in (B, T, D)
        ),
        grid_spec=pltpu.PrefetchScalarGridSpec(
            num_scalar_prefetch=0,
            grid=(B // B_tile, T // TT),
            in_specs=[
                step_in_spec,   # precomputed sig = x@Wx^T + bx + bb
                step_in_spec,   # raw x (needed for new_signal = beta * x)
                weight_spec,    # Wb^T
                weight_spec,    # We^T
                bias_spec,      # be
            ],
            out_specs=[ns_spec, beta_spec],
            scratch_shapes=[pltpu.VMEM((B_tile, D), jnp.float32)],
        ),
        compiler_params=pltpu.CompilerParams(
            # batch axis independent ("parallel", usable by v7x's 2nd TC);
            # time axis carries the beta recurrence -> "arbitrary".
            dimension_semantics=("parallel", "arbitrary"),
        ),
    )(sig, sensor_data, wbT, weT, be2)

    return new_signals, sens_weights


def sensor_attention_ref(sensor_data, params):
    """Pure-JAX reference of the PyTorch forward for verification."""
    wx, bx, wb, bb, we, be = params
    T, B, D = sensor_data.shape

    def step(beta, x_t):
        signal_out = x_t @ wx.T + bx
        beta_out = beta @ wb.T + bb
        merged = jnp.tanh(signal_out + beta_out)
        energy = merged @ we.T + be
        new_beta = jax.nn.softmax(energy, axis=1)
        return new_beta, (new_beta * x_t, new_beta)

    beta0 = jnp.zeros((B, D), jnp.float32)
    _, (new_signals, betas) = jax.lax.scan(step, beta0, sensor_data)
    return new_signals, jnp.transpose(betas, (1, 0, 2))


def init_params(key, D):
    ks = jax.random.split(key, 6)
    scale = 1.0 / jnp.sqrt(D)
    wx = jax.random.uniform(ks[0], (D, D), jnp.float32, -scale, scale)
    bx = jax.random.uniform(ks[1], (D,), jnp.float32, -scale, scale)
    wb = jax.random.uniform(ks[2], (D, D), jnp.float32, -scale, scale)
    bb = jax.random.uniform(ks[3], (D,), jnp.float32, -scale, scale)
    we = jax.random.uniform(ks[4], (D, D), jnp.float32, -scale, scale)
    be = jax.random.uniform(ks[5], (D,), jnp.float32, -scale, scale)
    return (wx, bx, wb, bb, we, be)


if __name__ == "__main__":
    T, B, D = 8, 2, 32  # seq=8, batch=2, input_dim=32

    key = jax.random.PRNGKey(0)
    k_x, k_p = jax.random.split(key)
    sensor_data = jax.random.normal(k_x, (T, B, D), jnp.float32)
    params = init_params(k_p, D)

    new_signals, sens_weights = sensor_attention(sensor_data, params)
    jax.block_until_ready((new_signals, sens_weights))

    ref_signals, ref_weights = sensor_attention_ref(sensor_data, params)
    assert new_signals.shape == (T, B, D)
    assert sens_weights.shape == (B, T, D)
    # approx=True reciprocal in the softmax -> tolerances relaxed to ~1e-3 level.
    assert jnp.allclose(new_signals, ref_signals, atol=3e-3, rtol=3e-3)
    assert jnp.allclose(sens_weights, ref_weights, atol=3e-3, rtol=3e-3)

    print("KERNEL_OK")
</pallas_src>

<mosaic_0001>
module attributes {stable_mosaic.version = 11 : i64} {
  func.func @_projection_kernel(%arg0: i32, %arg1: memref<16x32xf32, #tpu.memory_space<vmem>>, %arg2: memref<32x32xf32, #tpu.memory_space<vmem>>, %arg3: memref<1x32xf32, #tpu.memory_space<vmem>>, %arg4: memref<16x32xf32, #tpu.memory_space<vmem>>) attributes {dimension_semantics = [#tpu.dimension_semantics<parallel>], iteration_bounds = array<i64: 1>, scalar_prefetch = 0 : i64, scratch_operands = 0 : i64, tpu.core_type = #tpu.core_type<tc>, window_params = [{transform_indices = @transform_0, window_bounds = array<i64: 16, 32>}, {pipeline_mode = #tpu.pipeline_mode<synchronous>, transform_indices = @transform_1, window_bounds = array<i64: 32, 32>}, {pipeline_mode = #tpu.pipeline_mode<synchronous>, transform_indices = @transform_2, window_bounds = array<i64: 1, 32>}, {transform_indices = @transform_3, window_bounds = array<i64: 16, 32>}]} {
    %c0 = arith.constant 0 : index
    %c0_0 = arith.constant 0 : index
    %0 = vector.load %arg1[%c0, %c0_0] : memref<16x32xf32, #tpu.memory_space<vmem>>, vector<16x32xf32>
    %c0_1 = arith.constant 0 : index
    %c0_2 = arith.constant 0 : index
    %1 = vector.load %arg2[%c0_1, %c0_2] : memref<32x32xf32, #tpu.memory_space<vmem>>, vector<32x32xf32>
    %cst = arith.constant dense<0.000000e+00> : vector<16x32xf32>
    %2 = tpu.matmul %0, %1, %cst {dimension_numbers = #tpu.dot_dimension_numbers<[1], [0], [0], [1], [0, 0, 1, 1], [], []>} : vector<16x32xf32>, vector<32x32xf32>, vector<16x32xf32> -> vector<16x32xf32>
    %c0_3 = arith.constant 0 : index
    %c0_4 = arith.constant 0 : index
    %3 = vector.load %arg3[%c0_3, %c0_4] : memref<1x32xf32, #tpu.memory_space<vmem>>, vector<1x32xf32>
    %4 = vector.broadcast %3 : vector<1x32xf32> to vector<16x32xf32>
    %5 = arith.addf %2, %4 : vector<16x32xf32>
    %c0_5 = arith.constant 0 : index
    %c0_6 = arith.constant 0 : index
    %6 = vector.load %arg4[%c0_5, %c0_6] : memref<16x32xf32, #tpu.memory_space<vmem>>, vector<16x32xf32>
    tpu.vector_store %arg4[%c0_5, %c0_6], %5 {strides = array<i32>} : memref<16x32xf32, #tpu.memory_space<vmem>>, vector<16x32xf32>,
    return
  }
  func.func @transform_0(%arg0: i32) -> (i32, i32) {
    %c0_i32 = arith.constant 0 : i32
    %c0_i32_0 = arith.constant 0 : i32
    return %arg0, %c0_i32 : i32, i32
  }
  func.func @transform_1(%arg0: i32) -> (i32, i32) {
    %c0_i32 = arith.constant 0 : i32
    %c0_i32_0 = arith.constant 0 : i32
    %c0_i32_1 = arith.constant 0 : i32
    return %c0_i32, %c0_i32_0 : i32, i32
  }
  func.func @transform_2(%arg0: i32) -> (i32, i32) {
    %c0_i32 = arith.constant 0 : i32
    %c0_i32_0 = arith.constant 0 : i32
    %c0_i32_1 = arith.constant 0 : i32
    return %c0_i32, %c0_i32_0 : i32, i32
  }
  func.func @transform_3(%arg0: i32) -> (i32, i32) {
    %c0_i32 = arith.constant 0 : i32
    %c0_i32_0 = arith.constant 0 : i32
    return %arg0, %c0_i32 : i32, i32
  }
}

</mosaic_0001>

<llo_original>
// kernel: tpu_custom_call.1
$region0: #{tpu_custom_call.1}
  #allocation0 [shape = 'u32[]', space=smem, size = 0x4, offset = 0x4, fixed_abs, tag = 'smem constant byte address 0x4 - core index']
  #allocation1 [shape = 'u32[144,128]{1,0:T(1,128)}', space=vmem, size = 0x12000, scoped, tag = 'internal scratch']
  %s0 = inlined_call_operand.hbm [shape: f32[16,32], index: 0, kind: input, shape index: {}]
  %s1 = inlined_call_operand.hbm [shape: f32[32,32], index: 1, kind: input, shape index: {}]
  %s2 = inlined_call_operand.vmem [shape: f32[1,32], index: 2, kind: input, shape index: {}]
  %s3 = inlined_call_operand.hbm [shape: f32[16,32], index: 3, kind: output, shape index: {}]
  %s4 = sld [smem:[#allocation0]]
  $region30: #{tpu_custom_call.1} parent=0
    _
  %s6 = ssub.s32 1, %s4
  %s7 = scalar_select 0, %s6, %s4
  $region1: #{tpu_custom_call.1} parent=0
    #allocation2 [shape = 'u8[8192]{0}', space=vmem, size = 0x2000, scoped, tag = 'input window, operand 0, single buffered']
    #allocation3 [shape = 's32[1]{0}', space=sflag, size = 0x4, scoped, tag = 'scoped memory for tpu_custom_call.1']
    #allocation4 [shape = 's32[1]{0}', space=sflag, size = 0x4, scoped, tag = 'scoped memory for tpu_custom_call.1']
    #allocation5 [shape = 'u8[16384]{0}', space=vmem, size = 0x4000, scoped, tag = 'input window, operand 1, single buffered']
    #allocation6 [shape = 's32[1]{0}', space=sflag, size = 0x4, scoped, tag = 'scoped memory for tpu_custom_call.1']
    #allocation7 [shape = 'u8[8192]{0}', space=vmem, size = 0x2000, scoped, tag = 'output window, operand 0, single buffered']
    %8 = vsyncpa [#allocation3], 0
    %9 = vsyncpa [#allocation6], 0
    %10 = vsyncpa [#allocation4], 0
    // Predicated region
    $region2: #{tpu_custom_call.1} parent=1 // pred_check
      _
    $region3: #{tpu_custom_call.1} parent=1 // pred_check_branch
      %12 = sbr.rel (0) target = $region5
    $region4: #{tpu_custom_call.1} parent=1 // pred_region
      %s14 = ssub.s32 256, 256
      %15 = vsyncadd [#allocation3], %s14
      %s16 = sshll.u32 [#allocation2], 4
      %s17 = int_to_ptr.vmem [resolvable:$true] %s16
      %22 = dma.hbm_to_vmem [thread:$0]  %s0, 256, %s17, [#allocation3], 128, 128, 8
    $region5: #{tpu_custom_call.1} parent=1 // pred_fallthru
      _
    // Predicated region
    $region6: #{tpu_custom_call.1} parent=1 // pred_check
      _
    $region7: #{tpu_custom_call.1} parent=1 // pred_check_branch
      %24 = sbr.rel (0) target = $region9
    $region8: #{tpu_custom_call.1} parent=1 // pred_region
      %s26 = ssub.s32 512, 512
      %27 = vsyncadd [#allocation6], %s26
      %s28 = sshll.u32 [#allocation5], 4
      %s29 = int_to_ptr.vmem [resolvable:$true] %s28
      %34 = dma.hbm_to_vmem [thread:$0]  %s1, 512, %s29, [#allocation6], 128, 128, 8
    $region9: #{tpu_custom_call.1} parent=1 // pred_fallthru
      _
    // Predicated region
    $region10: #{tpu_custom_call.1} parent=1 // pred_check
      _
    $region11: #{tpu_custom_call.1} parent=1 // pred_check_branch
      %36 = sbr.rel (0) target = $region13
    $region12: #{tpu_custom_call.1} parent=1 // pred_region
      _
    $region13: #{tpu_custom_call.1} parent=1 // pred_fallthru
      _
    // Predicated region
    $region14: #{tpu_custom_call.1} parent=1 // pred_check
      _
    $region15: #{tpu_custom_call.1} parent=1 // pred_check_branch
      %38 = sbr.rel (0) target = $region17
    $region16: #{tpu_custom_call.1} parent=1 // pred_region
      %39 = dma.done [#allocation3], 256
    $region17: #{tpu_custom_call.1} parent=1 // pred_fallthru
      _
    // Predicated region
    $region18: #{tpu_custom_call.1} parent=1 // pred_check
      _
    $region19: #{tpu_custom_call.1} parent=1 // pred_check_branch
      %41 = sbr.rel (0) target = $region21
    $region20: #{tpu_custom_call.1} parent=1 // pred_region
      %42 = dma.done [#allocation6], 512
    $region21: #{tpu_custom_call.1} parent=1 // pred_fallthru
      _
    %v43 = vld [vmem:[#allocation2] sm:$0xff]
    %v44 = vld [vmem:[#allocation2 + $0x8] sm:$0xff]
    %v45 = vld [vmem:[#allocation5] sm:$0xff]
    %v46 = vld [vmem:[#allocation5 + $0x8] sm:$0xff]
    %v47 = vld [vmem:[#allocation5 + $0x10] sm:$0xff]
    %v48 = vld [vmem:[#allocation5 + $0x18] sm:$0xff]
    %v49 = vld [vmem:[%s2] sm:$0x1]
    %v51 = vlaneseq
    %v52 = vshrl.u32 %v51, 7
    %v53 = vsub.s32 0, %v52
    %v54 = vrot.slane %v49, %v53
    %vm56 = vcmask 261120
    %v58 = vsel %vm56, %v43, 0
    %v61 = vsel %vm56, %v44, 0
    %63 = vmatprep.subr.mxu0 0.0
    %64 = vmatpush1.msra.mxu0 0.0
    %65 = vmatprep.subr.mxu0 0.0
    %66 = vmatpush1.msra.mxu0 0.0
    %67 = vmatprep.subr.mxu0 0.0
    %68 = vmatpush1.msra.mxu0 0.0
    %69 = vmatprep.subr.mxu0 0.0
    %70 = vmatpush1.msra.mxu0 0.0
    %71 = vmatprep.subr.mxu0 0.0
    %72 = vmatpush1.msra.mxu0 0.0
    %73 = vmatprep.subr.mxu0 0.0
    %74 = vmatpush1.msra.mxu0 0.0
    %75 = vmatprep.subr.mxu0 0.0
    %76 = vmatpush1.msra.mxu0 0.0
    %77 = vmatprep.subr.mxu0 0.0
    %78 = vmatpush1.msra.mxu0 0.0
    %79 = vmatprep.subr.mxu0 0.0
    %80 = vmatpush1.msra.mxu0 0.0
    %81 = vmatprep.subr.mxu0 0.0
    %82 = vmatpush1.msra.mxu0 0.0
    %83 = vmatprep.subr.mxu0 0.0
    %84 = vmatpush1.msra.mxu0 0.0
    %85 = vmatprep.subr.mxu0 0.0
    %86 = vmatpush1.msra.mxu0 0.0
    %87 = vmatprep.subr.mxu0 0.0
    %88 = vmatpush1.msra.mxu0 %v48
    %89 = vmatprep.subr.mxu0 0.0
    %90 = vmatpush1.msra.mxu0 %v47
    %91 = vmatprep.subr.mxu0 0.0
    %92 = vmatpush1.msra.mxu0 %v46
    %93 = vmatprep.subr.mxu0 0.0
    %94 = vmatpush1.msra.mxu0 %v45
    %95 = vmatprep.subr.mxu0 0.0
    %96 = vmatpush2.msra.mxu0 0.0
    %97 = vmatprep.subr.mxu0 0.0
    %98 = vmatpush2.msra.mxu0 0.0
    %99 = vmatprep.subr.mxu0 0.0
    %100 = vmatpush2.msra.mxu0 0.0
    %101 = vmatprep.subr.mxu0 0.0
    %102 = vmatpush2.msra.mxu0 0.0
    %103 = vmatprep.subr.mxu0 0.0
    %104 = vmatpush2.msra.mxu0 0.0
    %105 = vmatprep.subr.mxu0 0.0
    %106 = vmatpush2.msra.mxu0 0.0
    %107 = vmatprep.subr.mxu0 0.0
    %108 = vmatpush2.msra.mxu0 0.0
    %109 = vmatprep.subr.mxu0 0.0
    %110 = vmatpush2.msra.mxu0 0.0
    %111 = vmatprep.subr.mxu0 0.0
    %112 = vmatpush2.msra.mxu0 0.0
    %113 = vmatprep.subr.mxu0 0.0
    %114 = vmatpush2.msra.mxu0 0.0
    %115 = vmatprep.subr.mxu0 0.0
    %116 = vmatpush2.msra.mxu0 0.0
    %117 = vmatprep.subr.mxu0 0.0
    %118 = vmatpush2.msra.mxu0 0.0
    %119 = vmatprep.subr.mxu0 0.0
    %120 = vmatpush2.msra.mxu0 0.0
    %121 = vmatprep.subr.mxu0 0.0
    %122 = vmatpush2.msra.mxu0 0.0
    %123 = vmatprep.subr.mxu0 0.0
    %124 = vmatpush2.msra.mxu0 0.0
    %125 = vmatprep.subr.mxu0 0.0
    %126 = vmatpush2.msra.mxu0 0.0
    %127 = vmatprep.mubr.f32.mxu0 0.0
    %128 = vmatmul.mubr.f32.gmra.mxu0 %v58
    %v129 = vpop.f32.mrf.mxu0
    %v130 = vadd.f32 %v54, %v129
    %v131 = vpop.f32.mrf.mxu0
    %132 = vmatprep.mubr.f32.mxu0 0.0
    %133 = vmatmul.mubr.f32.gmra.mxu0 %v61
    %v134 = vpop.f32.mrf.mxu0
    %v135 = vadd.f32 %v54, %v134
    %v136 = vpop.f32.mrf.mxu0
    %137 = vdwg.mxu0
    %138 = vst.msk [vmem:[#allocation7] sm:$0xff] %vm56, %v130
    %139 = vst.msk [vmem:[#allocation7 + $0x8] sm:$0xff] %vm56, %v135
    // Predicated region
    $region22: #{tpu_custom_call.1} parent=1 // pred_check
      _
    $region23: #{tpu_custom_call.1} parent=1 // pred_check_branch
      %141 = sbr.rel (0) target = $region25
    $region24: #{tpu_custom_call.1} parent=1 // pred_region
      %s143 = ssub.s32 256, 256
      %144 = vsyncadd [#allocation4], %s143
      %s145 = sshll.u32 [#allocation7], 4
      %s146 = int_to_ptr.vmem [resolvable:$true] %s145
      %151 = dma.vmem_to_hbm [thread:$0]  %s146, 256, %s3, [#allocation4], 128, 128, 8
    $region25: #{tpu_custom_call.1} parent=1 // pred_fallthru
      _
    // Predicated region
    $region26: #{tpu_custom_call.1} parent=1 // pred_check
      _
    $region27: #{tpu_custom_call.1} parent=1 // pred_check_branch
      %153 = sbr.rel (0) target = $region29
    $region28: #{tpu_custom_call.1} parent=1 // pred_region
      %154 = dma.done [#allocation4], 256
    $region29: #{tpu_custom_call.1} parent=1 // pred_fallthru
      _
    %155 = vsyncpa [#allocation3], 1
    %156 = vsyncpa [#allocation6], 1
    %157 = vsyncpa [#allocation4], 1

</llo_original>
